<compile_context>
chip_gen: v6e
topology: v6e:2x2x1
jax: 0.10.0
libtpu: 0.0.40
codegen_flags: <defaults>
</compile_context>

<pallas_src>
import functools

import jax
import jax.numpy as jnp
import numpy as np
from jax import lax
from jax.experimental import pallas as pl
from jax.experimental.pallas import tpu as pltpu


def _vmem_budgets():
    """Derive (input-block budget, scoped VMEM limit) from the chip's VMEM size."""
    try:
        cap = int(pltpu.get_tpu_info().vmem_capacity_bytes)
    except Exception:
        cap = 64 * 1024 * 1024          # conservative default (fits every generation)
    input_budget = int(cap * 0.60)      # double-buffered resident input planes
    vmem_limit = int(cap * 0.90)        # scoped VMEM ceiling handed to Mosaic
    return input_budget, vmem_limit


def _choose_time_tiling(T, per_tt_bytes, input_budget, max_time_chunk):
    """Pick the time-chunk length tt (lane extent per block) and the #chunks."""
    max_tt = max(128, input_budget // max(per_tt_bytes, 1))
    if max_time_chunk is not None:
        max_tt = min(max_tt, max(128, int(max_time_chunk)))
    if T <= max_tt:
        return T, 1                      # single chunk: block extent == full T
    tt = (max_tt // 128) * 128           # lane extent must be a multiple of 128
    # TODO(synk): if J*BN is so large that even tt=128 overflows VMEM, a
    # fallback per-pair path (old design) would be needed; not implemented.
    return tt, pl.cdiv(T, tt)


def _to_planes(sx):
    """(B, N, J, A, T) complex -> (J, 2, B*N, T) float32 packed re/im planes."""
    B, N, J, _, T = sx.shape
    x = sx[:, :, :, 0, :]                                      # phase channel 0
    x = jnp.transpose(x, (2, 0, 1, 3)).reshape(J, B * N, T)
    return jnp.stack([jnp.real(x), jnp.imag(x)], axis=1).astype(jnp.float32)


def _cov_kernel(idx_l_ref, idx_r_ref,        # scalar prefetch (SMEM)
                *refs,                       # resident plane block(s) + output block
                inv_t, n_k, t_total, tt, cross):
    if cross:
        xl_ref, xr_ref, o_ref = refs         # (J, 2, BN, tt), (J, 2, BN, tt), (K, 2, BN)
    else:
        x_ref, o_ref = refs                  # auto-cov: both operands from one buffer
        xl_ref = xr_ref = x_ref

    kt = pl.program_id(0)

    @pl.when(kt == 0)
    def _init():
        o_ref[...] = jnp.zeros_like(o_ref)

    # Ragged-tail mask (statically elided when tt divides T): the boundary block
    # beyond T holds unspecified data, so zero its contribution before the sum.
    if t_total % tt != 0:
        valid = t_total - kt * tt
        mask = lax.broadcasted_iota(jnp.int32, (1, tt), 1) < valid
    else:
        mask = None

    def body(k, carry):
        il = idx_l_ref[k]
        ir = idx_r_ref[k]
        a = xl_ref[il, 0]                    # (BN, tt)  Re(xl)
        b = xl_ref[il, 1]                    #           Im(xl)
        c = xr_ref[ir, 0]                    #           Re(xr)
        d = xr_ref[ir, 1]                    #           Im(xr)
        # (a + i b) * conj(c + i d) = (a c + b d) + i (b c - a d); sum over time.
        re = a * c + b * d
        im = b * c - a * d
        if mask is not None:
            re = jnp.where(mask, re, 0.0)
            im = jnp.where(mask, im, 0.0)
        part = jnp.stack([jnp.sum(re, axis=-1), jnp.sum(im, axis=-1)], axis=0)  # (2, BN)
        o_ref[k] = o_ref[k] + part
        return carry

    lax.fori_loop(0, n_k, body, 0)

    @pl.when(kt == pl.num_programs(0) - 1)
    def _finalize():
        o_ref[...] = o_ref[...] * inv_t


@functools.partial(jax.jit, static_argnames=("cross", "max_time_chunk"))
def _cov_pallas(sxl, sxr, idx_l, idx_r, *, cross, max_time_chunk):
    B, N, Jl, _, T = sxl.shape
    BN = B * N
    Jr = sxr.shape[2]
    K = idx_l.shape[0]

    input_budget, vmem_limit = _vmem_budgets()
    n_planes = Jl + (Jr if cross else 0)
    per_tt_bytes = n_planes * 2 * BN * 4 * 2       # re/im * f32 * double buffer
    tt, n_kt = _choose_time_tiling(T, per_tt_bytes, input_budget, max_time_chunk)

    planes_l = _to_planes(sxl)                     # (Jl, 2, BN, T)
    inputs = [planes_l]
    in_specs = [pl.BlockSpec((Jl, 2, BN, tt), lambda kt, il, ir: (0, 0, 0, kt))]
    if cross:
        planes_r = _to_planes(sxr)
        inputs.append(planes_r)
        in_specs.append(pl.BlockSpec((Jr, 2, BN, tt), lambda kt, il, ir: (0, 0, 0, kt)))

    # Output: full-K, lane-dense, resident across the (reduction) time axis.
    o_spec = pl.BlockSpec((K, 2, BN), lambda kt, il, ir: (0, 0, 0))

    grid_spec = pltpu.PrefetchScalarGridSpec(
        num_scalar_prefetch=2,
        grid=(n_kt,),
        in_specs=in_specs,
        out_specs=o_spec,
        scratch_shapes=[],
    )

    kernel = functools.partial(_cov_kernel, inv_t=1.0 / T, n_k=K,
                               t_total=T, tt=tt, cross=cross)

    out = pl.pallas_call(
        kernel,
        grid_spec=grid_spec,
        out_shape=jax.ShapeDtypeStruct((K, 2, BN), jnp.float32),
        compiler_params=pltpu.CompilerParams(
            dimension_semantics=("arbitrary",),
            vmem_limit_bytes=vmem_limit),
    )(idx_l, idx_r, *inputs)

    y = lax.complex(out[:, 0, :], out[:, 1, :])    # (K, BN) complex64
    return jnp.transpose(y, (1, 0)).reshape(B, N, K, 1)


def cov_forward(sxl, sxr=None, *, idx_l, idx_r, max_time_chunk=None):
    """Pallas equivalent of Cov.forward (default TimeAverage, window=None)."""
    # TODO(synk): the ScaleIndexer / pandas scale-description construction is
    # host-side metadata with no Pallas equivalent; (idx_l, idx_r) are taken as
    # precomputed index arrays.
    # TODO(synk): the optional TimeAverage(window=...) time-subset is not
    # implemented; only the default window=None (full time mean) path is supported.
    idx_l = np.asarray(idx_l, dtype=np.int32)
    idx_r = np.asarray(idx_r, dtype=np.int32)
    Jl = sxl.shape[2]
    Jr = Jl if sxr is None else sxr.shape[2]
    assert idx_l.ndim == 1 and idx_l.shape == idx_r.shape
    assert np.all((idx_l >= 0) & (idx_l < Jl)), "idx_l out of range"
    assert np.all((idx_r >= 0) & (idx_r < Jr)), "idx_r out of range"

    cross = sxr is not None
    return _cov_pallas(sxl, sxr if cross else sxl,
                       jnp.asarray(idx_l), jnp.asarray(idx_r),
                       cross=cross, max_time_chunk=max_time_chunk)


def cov_reference(sxl, sxr, idx_l, idx_r):
    """Pure-JAX reference mirroring the PyTorch module."""
    xl = sxl[:, :, idx_l, 0, :]
    xr = sxr[:, :, idx_r, 0, :]
    return jnp.mean(xl * jnp.conj(xr), axis=-1, keepdims=True)


if __name__ == "__main__":
    key = jax.random.PRNGKey(0)

    # Case 1: cross-covariance, small T (single time chunk), repeated scale indices.
    B, N, J, A, T = 2, 3, 6, 2, 16
    idx_l = np.array([0, 1, 2, 3, 4, 5, 0, 1, 2], dtype=np.int32)
    idx_r = np.array([0, 1, 2, 3, 4, 5, 1, 2, 3], dtype=np.int32)
    k1, k2, k3, k4 = jax.random.split(key, 4)
    sxl = (jax.random.normal(k1, (B, N, J, A, T))
           + 1j * jax.random.normal(k2, (B, N, J, A, T))).astype(jnp.complex64)
    sxr = (jax.random.normal(k3, (B, N, J, A, T))
           + 1j * jax.random.normal(k4, (B, N, J, A, T))).astype(jnp.complex64)

    y = jax.block_until_ready(cov_forward(sxl, sxr, idx_l=idx_l, idx_r=idx_r))
    y_ref = cov_reference(sxl, sxr, jnp.asarray(idx_l), jnp.asarray(idx_r))
    assert y.shape == (B, N, idx_l.shape[0], 1), y.shape
    np.testing.assert_allclose(np.asarray(y), np.asarray(y_ref), atol=1e-5, rtol=1e-4)

    # Case 2: auto-covariance (sxr defaults to sxl) exercising the time-chunked
    # accumulation path with a ragged last chunk (T=320, tt=128 -> 3 chunks).
    B2, N2, J2, A2, T2 = 2, 2, 5, 2, 320
    idx_l2 = np.array([0, 0, 1, 2, 3, 4, 2], dtype=np.int32)
    idx_r2 = np.array([0, 1, 1, 2, 4, 4, 3], dtype=np.int32)
    k5, k6 = jax.random.split(k4, 2)
    sx2 = (jax.random.normal(k5, (B2, N2, J2, A2, T2))
           + 1j * jax.random.normal(k6, (B2, N2, J2, A2, T2))).astype(jnp.complex64)

    y2 = jax.block_until_ready(
        cov_forward(sx2, idx_l=idx_l2, idx_r=idx_r2, max_time_chunk=128))
    y2_ref = cov_reference(sx2, sx2, jnp.asarray(idx_l2), jnp.asarray(idx_r2))
    assert y2.shape == (B2, N2, idx_l2.shape[0], 1), y2.shape
    np.testing.assert_allclose(np.asarray(y2), np.asarray(y2_ref), atol=1e-5, rtol=1e-4)

    print("KERNEL_OK")
</pallas_src>

<mosaic_0001>
module attributes {stable_mosaic.version = 11 : i64} {
  func.func @_cov_kernel(%arg0: i32, %arg1: memref<9xi32, #tpu.memory_space<smem>>, %arg2: memref<9xi32, #tpu.memory_space<smem>>, %arg3: memref<6x2x6x16xf32, #tpu.memory_space<vmem>>, %arg4: memref<6x2x6x16xf32, #tpu.memory_space<vmem>>, %arg5: memref<9x2x6xf32, #tpu.memory_space<vmem>>) attributes {dimension_semantics = [#tpu.dimension_semantics<arbitrary>], iteration_bounds = array<i64: 1>, scalar_prefetch = 2 : i64, scratch_operands = 0 : i64, tpu.core_type = #tpu.core_type<tc>, window_params = [{transform_indices = @transform_0, window_bounds = array<i64: 6, 2, 6, 16>}, {transform_indices = @transform_1, window_bounds = array<i64: 6, 2, 6, 16>}, {pipeline_mode = #tpu.pipeline_mode<synchronous>, transform_indices = @transform_2, window_bounds = array<i64: 9, 2, 6>}]} {
    %c0_i32 = arith.constant 0 : i32
    %0 = arith.cmpi eq, %arg0, %c0_i32 : i32
    %1 = arith.extui %0 : i1 to i32
    %c0_i32_0 = arith.constant 0 : i32
    %2 = arith.cmpi ne, %1, %c0_i32_0 : i32
    scf.if %2 {
      %cst = arith.constant 0.000000e+00 : f32
      %7 = vector.broadcast %cst : f32 to vector<9x2x6xf32>
      %c0 = arith.constant 0 : index
      %c0_5 = arith.constant 0 : index
      %c0_6 = arith.constant 0 : index
      %8 = vector.load %arg5[%c0, %c0_5, %c0_6] : memref<9x2x6xf32, #tpu.memory_space<vmem>>, vector<9x2x6xf32>
      tpu.vector_store %arg5[%c0, %c0_5, %c0_6], %7 {strides = array<i32>} : memref<9x2x6xf32, #tpu.memory_space<vmem>>, vector<9x2x6xf32>,
    } else {
    }
    %c0_i32_1 = arith.constant 0 : i32
    %c9_i32 = arith.constant 9 : i32
    %3 = arith.addi %c0_i32_1, %c9_i32 : i32
    %c1_i32 = arith.constant 1 : i32
    scf.for %arg6 = %c0_i32_1 to %3 step %c1_i32  : i32 {
      %7 = arith.index_cast %arg6 : i32 to index
      %8 = memref.load %arg1[%7] : memref<9xi32, #tpu.memory_space<smem>>
      %9 = arith.index_cast %arg6 : i32 to index
      %10 = memref.load %arg2[%9] : memref<9xi32, #tpu.memory_space<smem>>
      %11 = arith.index_cast %8 : i32 to index
      %c0 = arith.constant 0 : index
      %c0_5 = arith.constant 0 : index
      %c0_6 = arith.constant 0 : index
      %12 = vector.load %arg3[%11, %c0, %c0_5, %c0_6] : memref<6x2x6x16xf32, #tpu.memory_space<vmem>>, vector<1x1x6x16xf32>
      %13 = vector.shape_cast %12 : vector<1x1x6x16xf32> to vector<6x16xf32>
      %14 = arith.index_cast %8 : i32 to index
      %c1 = arith.constant 1 : index
      %c0_7 = arith.constant 0 : index
      %c0_8 = arith.constant 0 : index
      %15 = vector.load %arg3[%14, %c1, %c0_7, %c0_8] : memref<6x2x6x16xf32, #tpu.memory_space<vmem>>, vector<1x1x6x16xf32>
      %16 = vector.shape_cast %15 : vector<1x1x6x16xf32> to vector<6x16xf32>
      %17 = arith.index_cast %10 : i32 to index
      %c0_9 = arith.constant 0 : index
      %c0_10 = arith.constant 0 : index
      %c0_11 = arith.constant 0 : index
      %18 = vector.load %arg4[%17, %c0_9, %c0_10, %c0_11] : memref<6x2x6x16xf32, #tpu.memory_space<vmem>>, vector<1x1x6x16xf32>
      %19 = vector.shape_cast %18 : vector<1x1x6x16xf32> to vector<6x16xf32>
      %20 = arith.index_cast %10 : i32 to index
      %c1_12 = arith.constant 1 : index
      %c0_13 = arith.constant 0 : index
      %c0_14 = arith.constant 0 : index
      %21 = vector.load %arg4[%20, %c1_12, %c0_13, %c0_14] : memref<6x2x6x16xf32, #tpu.memory_space<vmem>>, vector<1x1x6x16xf32>
      %22 = vector.shape_cast %21 : vector<1x1x6x16xf32> to vector<6x16xf32>
      %23 = arith.mulf %13, %19 : vector<6x16xf32>
      %24 = arith.mulf %16, %22 : vector<6x16xf32>
      %25 = arith.addf %23, %24 : vector<6x16xf32>
      %26 = arith.mulf %16, %19 : vector<6x16xf32>
      %27 = arith.mulf %13, %22 : vector<6x16xf32>
      %28 = arith.subf %26, %27 : vector<6x16xf32>
      %cst = arith.constant dense<0.000000e+00> : vector<6xf32>
      %29 = vector.multi_reduction <add>, %25, %cst [1] : vector<6x16xf32> to vector<6xf32>
      %cst_15 = arith.constant dense<0.000000e+00> : vector<6xf32>
      %30 = vector.multi_reduction <add>, %28, %cst_15 [1] : vector<6x16xf32> to vector<6xf32>
      %31 = vector.shape_cast %29 : vector<6xf32> to vector<1x6xf32>
      %32 = vector.shape_cast %30 : vector<6xf32> to vector<1x6xf32>
      %33 = tpu.concatenate %31, %32 in 0 : vector<1x6xf32>, vector<1x6xf32> -> vector<2x6xf32>
      %34 = arith.index_cast %arg6 : i32 to index
      %c0_16 = arith.constant 0 : index
      %c0_17 = arith.constant 0 : index
      %35 = vector.load %arg5[%34, %c0_16, %c0_17] : memref<9x2x6xf32, #tpu.memory_space<vmem>>, vector<1x2x6xf32>
      %36 = vector.shape_cast %35 : vector<1x2x6xf32> to vector<2x6xf32>
      %37 = arith.addf %36, %33 : vector<2x6xf32>
      %38 = arith.index_cast %arg6 : i32 to index
      %c0_18 = arith.constant 0 : index
      %c0_19 = arith.constant 0 : index
      %39 = vector.load %arg5[%38, %c0_18, %c0_19] : memref<9x2x6xf32, #tpu.memory_space<vmem>>, vector<1x2x6xf32>
      %40 = vector.shape_cast %39 : vector<1x2x6xf32> to vector<2x6xf32>
      %41 = vector.shape_cast %37 : vector<2x6xf32> to vector<1x2x6xf32>
      tpu.vector_store %arg5[%38, %c0_18, %c0_19], %41 {strides = array<i32>} : memref<9x2x6xf32, #tpu.memory_space<vmem>>, vector<1x2x6xf32>,
    }
    %c9_i32_2 = arith.constant 9 : i32
    %c0_i32_3 = arith.constant 0 : i32
    %4 = arith.cmpi eq, %arg0, %c0_i32_3 : i32
    %5 = arith.extui %4 : i1 to i32
    %c0_i32_4 = arith.constant 0 : i32
    %6 = arith.cmpi ne, %5, %c0_i32_4 : i32
    scf.if %6 {
      %c0 = arith.constant 0 : index
      %c0_5 = arith.constant 0 : index
      %c0_6 = arith.constant 0 : index
      %7 = vector.load %arg5[%c0, %c0_5, %c0_6] : memref<9x2x6xf32, #tpu.memory_space<vmem>>, vector<9x2x6xf32>
      %cst = arith.constant 6.250000e-02 : f32
      %8 = vector.broadcast %cst : f32 to vector<9x2x6xf32>
      %9 = arith.mulf %7, %8 : vector<9x2x6xf32>
      %c0_7 = arith.constant 0 : index
      %c0_8 = arith.constant 0 : index
      %c0_9 = arith.constant 0 : index
      %10 = vector.load %arg5[%c0_7, %c0_8, %c0_9] : memref<9x2x6xf32, #tpu.memory_space<vmem>>, vector<9x2x6xf32>
      tpu.vector_store %arg5[%c0_7, %c0_8, %c0_9], %9 {strides = array<i32>} : memref<9x2x6xf32, #tpu.memory_space<vmem>>, vector<9x2x6xf32>,
    } else {
    }
    return
  }
  func.func @transform_0(%arg0: i32, %arg1: memref<9xi32, #tpu.memory_space<smem>>, %arg2: memref<9xi32, #tpu.memory_space<smem>>) -> (i32, i32, i32, i32) {
    %c0_i32 = arith.constant 0 : i32
    %c0_i32_0 = arith.constant 0 : i32
    %c0_i32_1 = arith.constant 0 : i32
    %c0_i32_2 = arith.constant 0 : i32
    return %c0_i32, %c0_i32_0, %c0_i32_1, %arg0 : i32, i32, i32, i32
  }
  func.func @transform_1(%arg0: i32, %arg1: memref<9xi32, #tpu.memory_space<smem>>, %arg2: memref<9xi32, #tpu.memory_space<smem>>) -> (i32, i32, i32, i32) {
    %c0_i32 = arith.constant 0 : i32
    %c0_i32_0 = arith.constant 0 : i32
    %c0_i32_1 = arith.constant 0 : i32
    %c0_i32_2 = arith.constant 0 : i32
    return %c0_i32, %c0_i32_0, %c0_i32_1, %arg0 : i32, i32, i32, i32
  }
  func.func @transform_2(%arg0: i32, %arg1: memref<9xi32, #tpu.memory_space<smem>>, %arg2: memref<9xi32, #tpu.memory_space<smem>>) -> (i32, i32, i32) {
    %c0_i32 = arith.constant 0 : i32
    %c0_i32_0 = arith.constant 0 : i32
    %c0_i32_1 = arith.constant 0 : i32
    %c0_i32_2 = arith.constant 0 : i32
    return %c0_i32, %c0_i32_0, %c0_i32_1 : i32, i32, i32
  }
}

</mosaic_0001>

<llo_original>
// kernel: custom-call.1
$region0: #{custom-call.1}
  %s0 = inlined_call_operand.hbm [shape: c64[2,3,6,2,16], index: 0, kind: input, shape index: {}]
  %s1 = inlined_call_operand.vmem [shape: f32[2,3,6,2,16], index: 1, kind: output, shape index: {}]
  %s2 = scalar_lea.hbm %s0, 1152
  $region1: #{custom-call.1} parent=0
    #allocation0 [shape = 's32[1]{0}', space=sflag, size = 0x4, scoped, tag = 'scoped memory for custom-call.1']
    %3 = vsyncpa [#allocation0], 0
    %s4 = sshll.u32 %s1, 4
    %s5 = int_to_ptr.vmem [resolvable:$true] %s4
    %7 = dma.hbm_to_vmem [thread:$0]  %s2, 1152, %s5, [#allocation0]
    %8 = dma.done [#allocation0], 1152
    %9 = vsyncpa [#allocation0], 1

// kernel: custom-call
$region0: #{custom-call}
  %s0 = inlined_call_operand.hbm [shape: c64[2,3,6,2,16], index: 0, kind: input, shape index: {}]
  %s1 = inlined_call_operand.vmem [shape: f32[2,3,6,2,16], index: 1, kind: output, shape index: {}]
  $region1: #{custom-call} parent=0
    #allocation0 [shape = 's32[1]{0}', space=sflag, size = 0x4, scoped, tag = 'scoped memory for custom-call']
    %2 = vsyncpa [#allocation0], 0
    %s3 = sshll.u32 %s1, 4
    %s4 = int_to_ptr.vmem [resolvable:$true] %s3
    %6 = dma.hbm_to_vmem [thread:$0]  %s0, 1152, %s4, [#allocation0]
    %7 = dma.done [#allocation0], 1152
    %8 = vsyncpa [#allocation0], 1

// kernel: custom-call.4
$region0: #{custom-call.4}
  %s0 = inlined_call_operand.vmem [shape: f32[2,3,9,1], index: 0, kind: input, shape index: {}]
  %s1 = inlined_call_operand.vmem [shape: f32[2,3,9,1], index: 1, kind: input, shape index: {}]
  %s2 = inlined_call_operand.vmem [shape: c64[2,3,9,1], index: 2, kind: output, shape index: {}]
  %s4 = scalar_lea.vmem %s2, 8
  %v5 = vld [vmem:[%s0] sm:$0xff]
  %6 = vst [vmem:[%s2] sm:$0xff] %v5
  %v7 = vld [vmem:[%s1] sm:$0xff]
  %8 = vst [vmem:[%s4] sm:$0xff] %v7

// kernel: _cov_pallas.1
$region0: #{_cov_pallas.1}
  #allocation0 [shape = 'u32[]', space=smem, size = 0x4, offset = 0x4, fixed_abs, tag = 'smem constant byte address 0x4 - core index']
  #allocation1 [shape = 'u32[144,128]{1,0:T(1,128)}', space=vmem, size = 0x12000, scoped, tag = 'internal scratch']
  #allocation2 [shape = 's32[1]{0}', space=sflag, size = 0x4, scoped, tag = 'scoped memory for _cov_pallas.1']
  #allocation3 [shape = 'u8[512]{0}', space=smem, size = 0x200, scoped, tag = 'prefetched SMEM operand 0']
  #allocation4 [shape = 'u8[512]{0}', space=smem, size = 0x200, scoped, tag = 'prefetched SMEM operand 1']
  %s0 = inlined_call_operand.vmem [shape: s32[9], index: 0, kind: input, shape index: {}]
  %s1 = inlined_call_operand.vmem [shape: s32[9], index: 1, kind: input, shape index: {}]
  %s2 = inlined_call_operand.vmem [shape: f32[6,2,6,16], index: 2, kind: input, shape index: {}]
  %s3 = inlined_call_operand.vmem [shape: f32[6,2,6,16], index: 3, kind: input, shape index: {}]
  %s4 = inlined_call_operand.vmem [shape: f32[9,2,6], index: 4, kind: output, shape index: {}]
  %s5 = sld [smem:[#allocation0]]
  $region33: #{_cov_pallas.1} parent=0
    _
  %s7 = ssub.s32 1, %s5
  %s8 = scalar_select 0, %s7, %s5
  %s9 = sshll.u32 %s0, 4
  %s10 = int_to_ptr.vmem [resolvable:$true] %s9
  %12 = dma.vmem_to_smem %s10, 16, [#allocation3], [#allocation2]
  %s13 = sshll.u32 %s1, 4
  %s14 = int_to_ptr.vmem [resolvable:$true] %s13
  %16 = dma.vmem_to_smem %s14, 16, [#allocation4], [#allocation2]
  %17 = dma.done [#allocation2], 32
  %18 = sfence
  // Predicated region
  $region2: #{_cov_pallas.1} parent=0 // pred_check
    _
  $region3: #{_cov_pallas.1} parent=0 // pred_check_branch
    %20 = sbr.rel (0) target = $region5
  $region4: #{_cov_pallas.1} parent=0 // pred_region
    _
  $region5: #{_cov_pallas.1} parent=0 // pred_fallthru
    _
  // Predicated region
  $region6: #{_cov_pallas.1} parent=0 // pred_check
    _
  $region7: #{_cov_pallas.1} parent=0 // pred_check_branch
    %22 = sbr.rel (0) target = $region9
  $region8: #{_cov_pallas.1} parent=0 // pred_region
    _
  $region9: #{_cov_pallas.1} parent=0 // pred_fallthru
    _
  %p23 = scmp.eq.s32.totalorder 0, 0
  // Predicated region
  $region10: #{_cov_pallas.1} parent=0 // pred_check
    %p24 = pneg %p23
  $region11: #{_cov_pallas.1} parent=0 // pred_check_branch
    %26 = sbr.rel (%p24) target = $region13
  $region12: #{_cov_pallas.1} parent=0 // pred_region
    %vm27 = vcmask 41984
    %28 = vst.msk [vmem:[%s4] sm:$0x3] %vm27, 0.0
    %29 = vst.msk [vmem:[%s4 + $0x2] sm:$0x3] %vm27, 0.0
    %30 = vst.msk [vmem:[%s4 + $0x4] sm:$0x3] %vm27, 0.0
    %31 = vst.msk [vmem:[%s4 + $0x6] sm:$0x3] %vm27, 0.0
    %32 = vst.msk [vmem:[%s4 + $0x8] sm:$0x3] %vm27, 0.0
    %33 = vst.msk [vmem:[%s4 + $0xa] sm:$0x3] %vm27, 0.0
    %34 = vst.msk [vmem:[%s4 + $0xc] sm:$0x3] %vm27, 0.0
    %35 = vst.msk [vmem:[%s4 + $0xe] sm:$0x3] %vm27, 0.0
    %36 = vst.msk [vmem:[%s4 + $0x10] sm:$0x3] %vm27, 0.0
  $region13: #{_cov_pallas.1} parent=0 // pred_fallthru
    _
  loop: start=0, step=1, limit=9
  $region14: #{_cov_pallas.1} parent=0 // loop_pre_header
    _
  $region15: #{_cov_pallas.1} parent=0 // loop_header
    %s38 = sphi 0, %s42
    %p39 = scmp.ge.s32.totalorder %s38, 9
  $region16: #{_cov_pallas.1} parent=0 // loop_header_branch
    %41 = sbr.rel (%p39) target = $region20
  $region17: #{_cov_pallas.1} parent=0 // loop_body
    %s43 = sld [smem:[#allocation3 + %s38]]
    %s44 = sld [smem:[#allocation4 + %s38]]
    %s45 = smul.u32 %s43, 16
    %s46 = scalar_lea.vmem %s2, %s45
    %v47 = vld [vmem:[%s46] sm:$0x3f]
    %s48 = sadd.s32 8, %s45
    %s49 = scalar_lea.vmem %s2, %s48
    %v50 = vld [vmem:[%s49] sm:$0x3f]
    %s51 = smul.u32 %s44, 16
    %s52 = scalar_lea.vmem %s3, %s51
    %v53 = vld [vmem:[%s52] sm:$0x3f]
    %s54 = sadd.s32 8, %s51
    %s55 = scalar_lea.vmem %s3, %s54
    %v56 = vld [vmem:[%s55] sm:$0x3f]
    %v57 = vmul.f32 %v47, %v53
    %v58 = vmul.f32 %v50, %v56
    %v59 = vadd.f32 %v57, %v58
    %v60 = vmul.f32 %v50, %v53
    %v61 = vmul.f32 %v47, %v56
    %v62 = vsub.f32 %v60, %v61
    %vm63 = vcmask 128000
    %v64 = vsel %vm63, %v59, 0.0
    %65 = vadd.xlane.f32.xlu0 %v64
    %v66 = vpop.xlane.xlu0 %65
    %v67 = vsel %vm63, %v62, 0.0
    %68 = vadd.xlane.f32.xlu0 %v67
    %v69 = vpop.xlane.xlu0 %68
    %v71 = vlaneseq
    %v72 = vand.u32 %v71, 127
    %v73 = vlaneseq
    %v74 = vshrl.u32 %v73, 7
    %v75 = vsub.s32 %v72, %v74
    %v76 = vrot.slane %v66, %v75
    %v79 = vlaneseq
    %v80 = vshrl.u32 %v79, 7
    %v81 = vsub.s32 %v72, %v80
    %v82 = vrot.slane %v69, %v81
    %vm84 = vcmask 1040384
    %v85 = vsel %vm84, %v76, %v82
    %s86 = smul.u32 %s38, 2
    %s87 = scalar_lea.vmem %s4, %s86
    %v88 = vld [vmem:[%s87] sm:$0x3]
    %v89 = vadd.f32 %v88, %v85
    %vm90 = vcmask 41984
    %91 = vst.msk [vmem:[%s87] sm:$0x3] %vm90, %v89
  $region18: #{_cov_pallas.1} parent=0 // loop_footer
    %s42 = sadd.s32 1, %s38
  $region19: #{_cov_pallas.1} parent=0 // loop_footer_branch
    %37 = sbr.rel target = $region15
  $region20: #{_cov_pallas.1} parent=0 // loop_exit
    _
  // Predicated region
  $region21: #{_cov_pallas.1} parent=0 // pred_check
    %p92 = pneg %p23
  $region22: #{_cov_pallas.1} parent=0 // pred_check_branch
    %94 = sbr.rel (%p92) target = $region24
  $region23: #{_cov_pallas.1} parent=0 // pred_region
    %v95 = vld [vmem:[%s4] sm:$0x3]
    %v96 = vld [vmem:[%s4 + $0x2] sm:$0x3]
    %v97 = vld [vmem:[%s4 + $0x4] sm:$0x3]
    %v98 = vld [vmem:[%s4 + $0x6] sm:$0x3]
    %v99 = vld [vmem:[%s4 + $0x8] sm:$0x3]
    %v100 = vld [vmem:[%s4 + $0xa] sm:$0x3]
    %v101 = vld [vmem:[%s4 + $0xc] sm:$0x3]
    %v102 = vld [vmem:[%s4 + $0xe] sm:$0x3]
    %v103 = vld [vmem:[%s4 + $0x10] sm:$0x3]
    %v104 = vmul.f32 %v95, 0.0625
    %v105 = vmul.f32 %v96, 0.0625
    %v106 = vmul.f32 %v97, 0.0625
    %v107 = vmul.f32 %v98, 0.0625
    %v108 = vmul.f32 %v99, 0.0625
    %v109 = vmul.f32 %v100, 0.0625
    %v110 = vmul.f32 %v101, 0.0625
    %v111 = vmul.f32 %v102, 0.0625
    %v112 = vmul.f32 %v103, 0.0625
    %vm113 = vcmask 41984
    %114 = vst.msk [vmem:[%s4] sm:$0x3] %vm113, %v104
    %115 = vst.msk [vmem:[%s4 + $0x2] sm:$0x3] %vm113, %v105
    %116 = vst.msk [vmem:[%s4 + $0x4] sm:$0x3] %vm113, %v106
    %117 = vst.msk [vmem:[%s4 + $0x6] sm:$0x3] %vm113, %v107
    %118 = vst.msk [vmem:[%s4 + $0x8] sm:$0x3] %vm113, %v108
    %119 = vst.msk [vmem:[%s4 + $0xa] sm:$0x3] %vm113, %v109
    %120 = vst.msk [vmem:[%s4 + $0xc] sm:$0x3] %vm113, %v110
    %121 = vst.msk [vmem:[%s4 + $0xe] sm:$0x3] %vm113, %v111
    %122 = vst.msk [vmem:[%s4 + $0x10] sm:$0x3] %vm113, %v112
  $region24: #{_cov_pallas.1} parent=0 // pred_fallthru
    _
  // Predicated region
  $region25: #{_cov_pallas.1} parent=0 // pred_check
    _
  $region26: #{_cov_pallas.1} parent=0 // pred_check_branch
    %124 = sbr.rel (0) target = $region28
  $region27: #{_cov_pallas.1} parent=0 // pred_region
    _
  $region28: #{_cov_pallas.1} parent=0 // pred_fallthru
    _
  // Predicated region
  $region29: #{_cov_pallas.1} parent=0 // pred_check
    _
  $region30: #{_cov_pallas.1} parent=0 // pred_check_branch
    %126 = sbr.rel (0) target = $region32
  $region31: #{_cov_pallas.1} parent=0 // pred_region
    _
  $region32: #{_cov_pallas.1} parent=0 // pred_fallthru
    _

</llo_original>
